<compile_context>
chip_gen: v7x
topology: tpu7x:2x2x1
jax: 0.10.0
libtpu: 0.0.40
codegen_flags: <defaults>
</compile_context>

<pallas_src>
import jax
import jax.numpy as jnp
from jax.experimental import pallas as pl
from jax.experimental.pallas import tpu as pltpu

# ----------------------------- model sizes ---------------------------------
SEQ = 8          # sequence length
BATCH = 2        # batch size
INPUT_SIZE = 16  # LSTM input feature size
HIDDEN = 32      # LSTM hidden size
MLP = 128        # fc1 / fc2 width

# SoftClamp(5, 2): definition is not included in the provided source.
# TODO(synk): confirm exact SoftClamp formula; here we use a*tanh(x/b), a=5, b=2.
SOFTCLAMP_A = 5.0
SOFTCLAMP_B = 2.0

# Packed-slab row offsets (slab is (50, 4*HIDDEN) = (50, 128)).
R_WIH = 0                       # rows  0..15 : W_ih^T           (INPUT_SIZE, 4H)
R_WHH = INPUT_SIZE              # rows 16..47 : W_hh^T           (HIDDEN, 4H)
R_B = INPUT_SIZE + HIDDEN       # row  48     : b_ih + b_hh      (1, 4H)
R_HEAD = INPUT_SIZE + HIDDEN + 1  # row 49    : [w_eff (0:H) | b_eff (H) | 0...]
SLAB_ROWS = INPUT_SIZE + HIDDEN + 2


def lstm_mlp_kernel(x_ref, slab_ref, out_ref):
    """Single-core kernel: full LSTM recurrence + folded affine head.

    x_ref    : (SEQ*BATCH, INPUT_SIZE)  VMEM  (time-major flattened input)
    slab_ref : (SLAB_ROWS, 4*HIDDEN)    VMEM  packed weights (see offsets above)
    out_ref  : (SEQ*BATCH, 1)           VMEM
    """
    H = HIDDEN

    # Static-sliced loads from the packed slab (one DMA fed them all).
    wih = slab_ref[R_WIH:R_WIH + INPUT_SIZE, :]              # (16, 128)
    whh = slab_ref[R_WHH:R_WHH + HIDDEN, :]                  # (32, 128)
    b = slab_ref[R_B:R_B + 1, :]                             # (1, 128)
    weff = slab_ref[R_HEAD:R_HEAD + 1, 0:HIDDEN]             # (1, 32) folded head weight
    beff = slab_ref[R_HEAD:R_HEAD + 1, HIDDEN:HIDDEN + 1]    # (1, 1)  folded head bias

    # ---- 1) Input projection for all timesteps at once, held as a value ----
    pre = jnp.dot(x_ref[...], wih,
                  preferred_element_type=jnp.float32) + b    # (SEQ*BATCH, 4H), 2 vregs

    # ---- 2) Serial recurrence, fully unrolled, state carried in vregs ------
    h = jnp.zeros((BATCH, HIDDEN), jnp.float32)
    c = jnp.zeros((BATCH, HIDDEN), jnp.float32)
    hs_list = []
    for t in range(SEQ):                                     # SEQ=8, static unroll
        r0 = t * BATCH
        gates = pre[r0:r0 + BATCH, :] + jnp.dot(
            h, whh, preferred_element_type=jnp.float32)      # (BATCH, 4H)

        # Two full-row EUP passes instead of four narrow ones, then slice.
        sg = jax.nn.sigmoid(gates)
        tg = jnp.tanh(gates)
        i_g = sg[:, 0 * H:1 * H]                             # PyTorch gate order
        f_g = sg[:, 1 * H:2 * H]                             #   i, f, g, o
        g_g = tg[:, 2 * H:3 * H]
        o_g = sg[:, 3 * H:4 * H]

        c = f_g * c + i_g * g_g
        h = o_g * jnp.tanh(c)
        hs_list.append(h)                                    # value, no VMEM store

    # ---- 3) Folded affine head + soft clamp, single store -----------------
    hs = jnp.concatenate(hs_list, axis=0)                    # (SEQ*BATCH, HIDDEN)
    # fc1->fc2->fc_final folded to h @ w_eff + b_eff; N=1 -> VPU mul + lane reduce.
    zf = jnp.sum(hs * weff, axis=-1, keepdims=True) + beff   # (SEQ*BATCH, 1)
    out_ref[...] = SOFTCLAMP_A * jnp.tanh(zf * (1.0 / SOFTCLAMP_B))


def lstm_mlp_forward(x, params):
    """Wrapper: flatten time*batch, fold the affine head, pack one weight slab."""
    (w_ih, w_hh, b_ih, b_hh, w1, b1, w2, b2, wf, bf) = params

    x2d = x.reshape(SEQ * BATCH, INPUT_SIZE).astype(jnp.float32)

    wih_t = w_ih.T                                  # (INPUT_SIZE, 4H)
    whh_t = w_hh.T                                  # (HIDDEN, 4H)
    b_row = (b_ih + b_hh).reshape(1, 4 * HIDDEN)    # combined LSTM bias

    # Fold the activation-free MLP head into one affine map: zf = h @ w_eff + b_eff.
    # Valid because the PyTorch forward has NO nonlinearity between fc1/fc2/fc_final.
    hp = jax.lax.Precision.HIGHEST                  # one-time precompute: use full f32
    w_eff = jnp.dot(w1.T, jnp.dot(w2.T, wf.T, precision=hp), precision=hp)       # (HIDDEN, 1)
    b_eff = jnp.dot(jnp.dot(b1, w2.T, precision=hp) + b2, wf.T, precision=hp) + bf  # (1,)

    head_row = jnp.zeros((1, 4 * HIDDEN), jnp.float32)
    head_row = head_row.at[0, :HIDDEN].set(w_eff[:, 0])
    head_row = head_row.at[0, HIDDEN].set(b_eff[0])

    # One packed slab -> one HBM->VMEM DMA instead of nine weight/bias DMAs.
    slab = jnp.concatenate([wih_t, whh_t, b_row, head_row], axis=0)  # (50, 128)

    vmem = pl.BlockSpec(memory_space=pltpu.MemorySpace.VMEM)

    out2d = pl.pallas_call(
        lstm_mlp_kernel,
        out_shape=jax.ShapeDtypeStruct((SEQ * BATCH, 1), jnp.float32),
        in_specs=[vmem, vmem],
        out_specs=vmem,
    )(x2d, slab)

    return out2d.reshape(SEQ, BATCH, 1)


# ---------------------------- reference (plain JAX) -------------------------
def lstm_mlp_reference(x, params):
    (w_ih, w_hh, b_ih, b_hh, w1, b1, w2, b2, wf, bf) = params
    H = HIDDEN

    def cell(carry, x_t):
        h, c = carry
        gates = x_t @ w_ih.T + h @ w_hh.T + b_ih + b_hh
        i_g = jax.nn.sigmoid(gates[:, 0 * H:1 * H])
        f_g = jax.nn.sigmoid(gates[:, 1 * H:2 * H])
        g_g = jnp.tanh(gates[:, 2 * H:3 * H])
        o_g = jax.nn.sigmoid(gates[:, 3 * H:4 * H])
        c_new = f_g * c + i_g * g_g
        h_new = o_g * jnp.tanh(c_new)
        return (h_new, c_new), h_new

    h0 = jnp.zeros((BATCH, HIDDEN), jnp.float32)
    c0 = jnp.zeros((BATCH, HIDDEN), jnp.float32)
    _, hs = jax.lax.scan(cell, (h0, c0), x)              # (SEQ, BATCH, HIDDEN)

    z1 = hs @ w1.T + b1
    z2 = z1 @ w2.T + b2
    zf = z2 @ wf.T + bf
    return SOFTCLAMP_A * jnp.tanh(zf / SOFTCLAMP_B)


def init_params(key):
    """Deterministic init mimicking PyTorch default U(-1/sqrt(fan), 1/sqrt(fan))."""
    keys = jax.random.split(key, 10)

    def u(k, shape, fan):
        bound = 1.0 / jnp.sqrt(float(fan))
        return jax.random.uniform(k, shape, jnp.float32, -bound, bound)

    w_ih = u(keys[0], (4 * HIDDEN, INPUT_SIZE), HIDDEN)
    w_hh = u(keys[1], (4 * HIDDEN, HIDDEN), HIDDEN)
    b_ih = u(keys[2], (4 * HIDDEN,), HIDDEN)
    b_hh = u(keys[3], (4 * HIDDEN,), HIDDEN)
    w1 = u(keys[4], (MLP, HIDDEN), HIDDEN)
    b1 = u(keys[5], (MLP,), HIDDEN)
    w2 = u(keys[6], (MLP, MLP), MLP)
    b2 = u(keys[7], (MLP,), MLP)
    wf = u(keys[8], (1, MLP), MLP)
    bf = u(keys[9], (1,), MLP)
    return (w_ih, w_hh, b_ih, b_hh, w1, b1, w2, b2, wf, bf)


if __name__ == "__main__":
    key = jax.random.PRNGKey(0)
    k_x, k_p = jax.random.split(key)
    x = jax.random.normal(k_x, (SEQ, BATCH, INPUT_SIZE), jnp.float32)
    params = init_params(k_p)

    out = jax.block_until_ready(lstm_mlp_forward(x, params))
    ref = jax.block_until_ready(lstm_mlp_reference(x, params))

    assert out.shape == (SEQ, BATCH, 1), out.shape
    assert jnp.allclose(out, ref, atol=1e-4, rtol=1e-4), \
        f"max abs err = {jnp.max(jnp.abs(out - ref))}"
    print("KERNEL_OK")
</pallas_src>

<mosaic_0001>
module attributes {stable_mosaic.version = 11 : i64} {
  func.func @lstm_mlp_kernel(%arg0: memref<16x16xf32, #tpu.memory_space<vmem>>, %arg1: memref<50x128xf32, #tpu.memory_space<vmem>>, %arg2: memref<16x1xf32, #tpu.memory_space<vmem>>) attributes {dimension_semantics = [], scalar_prefetch = 0 : i64, scratch_operands = 0 : i64, tpu.core_type = #tpu.core_type<tc>} {
    %c0 = arith.constant 0 : index
    %c0_0 = arith.constant 0 : index
    %0 = vector.load %arg1[%c0, %c0_0] : memref<50x128xf32, #tpu.memory_space<vmem>>, vector<16x128xf32>
    %c16 = arith.constant 16 : index
    %c0_1 = arith.constant 0 : index
    %1 = vector.load %arg1[%c16, %c0_1] : memref<50x128xf32, #tpu.memory_space<vmem>>, vector<32x128xf32>
    %c48 = arith.constant 48 : index
    %c0_2 = arith.constant 0 : index
    %2 = vector.load %arg1[%c48, %c0_2] : memref<50x128xf32, #tpu.memory_space<vmem>>, vector<1x128xf32>
    %c49 = arith.constant 49 : index
    %c0_3 = arith.constant 0 : index
    %3 = vector.load %arg1[%c49, %c0_3] : memref<50x128xf32, #tpu.memory_space<vmem>>, vector<1x32xf32>
    %c49_4 = arith.constant 49 : index
    %c32 = arith.constant 32 : index
    %4 = vector.load %arg1[%c49_4, %c32] : memref<50x128xf32, #tpu.memory_space<vmem>>, vector<1x1xf32>
    %c0_5 = arith.constant 0 : index
    %c0_6 = arith.constant 0 : index
    %5 = vector.load %arg0[%c0_5, %c0_6] : memref<16x16xf32, #tpu.memory_space<vmem>>, vector<16x16xf32>
    %cst = arith.constant dense<0.000000e+00> : vector<16x128xf32>
    %6 = tpu.matmul %5, %0, %cst {dimension_numbers = #tpu.dot_dimension_numbers<[1], [0], [0], [1], [0, 0, 1, 1], [], []>} : vector<16x16xf32>, vector<16x128xf32>, vector<16x128xf32> -> vector<16x128xf32>
    %7 = vector.broadcast %2 : vector<1x128xf32> to vector<16x128xf32>
    %8 = arith.addf %6, %7 : vector<16x128xf32>
    %cst_7 = arith.constant 0.000000e+00 : f32
    %9 = vector.broadcast %cst_7 : f32 to vector<2x32xf32>
    %cst_8 = arith.constant 0.000000e+00 : f32
    %10 = vector.broadcast %cst_8 : f32 to vector<2x32xf32>
    %11 = vector.extract_strided_slice %8 {offsets = [0, 0], sizes = [2, 128], strides = [1, 1]} : vector<16x128xf32> to vector<2x128xf32>
    %cst_9 = arith.constant dense<0.000000e+00> : vector<2x128xf32>
    %12 = tpu.matmul %9, %1, %cst_9 {dimension_numbers = #tpu.dot_dimension_numbers<[1], [0], [0], [1], [0, 0, 1, 1], [], []>} : vector<2x32xf32>, vector<32x128xf32>, vector<2x128xf32> -> vector<2x128xf32>
    %13 = arith.addf %11, %12 : vector<2x128xf32>
    %14 = arith.negf %13 : vector<2x128xf32>
    %15 = math.exp %14 : vector<2x128xf32>
    %cst_10 = arith.constant 1.000000e+00 : f32
    %16 = vector.broadcast %cst_10 : f32 to vector<2x128xf32>
    %17 = arith.addf %16, %15 : vector<2x128xf32>
    %18 = arith.divf %16, %17 : vector<2x128xf32>
    %19 = math.tanh %13 : vector<2x128xf32>
    %20 = vector.extract_strided_slice %18 {offsets = [0, 0], sizes = [2, 32], strides = [1, 1]} : vector<2x128xf32> to vector<2x32xf32>
    %21 = vector.extract_strided_slice %18 {offsets = [0, 32], sizes = [2, 32], strides = [1, 1]} : vector<2x128xf32> to vector<2x32xf32>
    %22 = vector.extract_strided_slice %19 {offsets = [0, 64], sizes = [2, 32], strides = [1, 1]} : vector<2x128xf32> to vector<2x32xf32>
    %23 = vector.extract_strided_slice %18 {offsets = [0, 96], sizes = [2, 32], strides = [1, 1]} : vector<2x128xf32> to vector<2x32xf32>
    %24 = arith.mulf %21, %10 : vector<2x32xf32>
    %25 = arith.mulf %20, %22 : vector<2x32xf32>
    %26 = arith.addf %24, %25 : vector<2x32xf32>
    %27 = math.tanh %26 : vector<2x32xf32>
    %28 = arith.mulf %23, %27 : vector<2x32xf32>
    %29 = vector.extract_strided_slice %8 {offsets = [2, 0], sizes = [2, 128], strides = [1, 1]} : vector<16x128xf32> to vector<2x128xf32>
    %cst_11 = arith.constant dense<0.000000e+00> : vector<2x128xf32>
    %30 = tpu.matmul %28, %1, %cst_11 {dimension_numbers = #tpu.dot_dimension_numbers<[1], [0], [0], [1], [0, 0, 1, 1], [], []>} : vector<2x32xf32>, vector<32x128xf32>, vector<2x128xf32> -> vector<2x128xf32>
    %31 = arith.addf %29, %30 : vector<2x128xf32>
    %32 = arith.negf %31 : vector<2x128xf32>
    %33 = math.exp %32 : vector<2x128xf32>
    %cst_12 = arith.constant 1.000000e+00 : f32
    %34 = vector.broadcast %cst_12 : f32 to vector<2x128xf32>
    %35 = arith.addf %34, %33 : vector<2x128xf32>
    %36 = arith.divf %34, %35 : vector<2x128xf32>
    %37 = math.tanh %31 : vector<2x128xf32>
    %38 = vector.extract_strided_slice %36 {offsets = [0, 0], sizes = [2, 32], strides = [1, 1]} : vector<2x128xf32> to vector<2x32xf32>
    %39 = vector.extract_strided_slice %36 {offsets = [0, 32], sizes = [2, 32], strides = [1, 1]} : vector<2x128xf32> to vector<2x32xf32>
    %40 = vector.extract_strided_slice %37 {offsets = [0, 64], sizes = [2, 32], strides = [1, 1]} : vector<2x128xf32> to vector<2x32xf32>
    %41 = vector.extract_strided_slice %36 {offsets = [0, 96], sizes = [2, 32], strides = [1, 1]} : vector<2x128xf32> to vector<2x32xf32>
    %42 = arith.mulf %39, %26 : vector<2x32xf32>
    %43 = arith.mulf %38, %40 : vector<2x32xf32>
    %44 = arith.addf %42, %43 : vector<2x32xf32>
    %45 = math.tanh %44 : vector<2x32xf32>
    %46 = arith.mulf %41, %45 : vector<2x32xf32>
    %47 = vector.extract_strided_slice %8 {offsets = [4, 0], sizes = [2, 128], strides = [1, 1]} : vector<16x128xf32> to vector<2x128xf32>
    %cst_13 = arith.constant dense<0.000000e+00> : vector<2x128xf32>
    %48 = tpu.matmul %46, %1, %cst_13 {dimension_numbers = #tpu.dot_dimension_numbers<[1], [0], [0], [1], [0, 0, 1, 1], [], []>} : vector<2x32xf32>, vector<32x128xf32>, vector<2x128xf32> -> vector<2x128xf32>
    %49 = arith.addf %47, %48 : vector<2x128xf32>
    %50 = arith.negf %49 : vector<2x128xf32>
    %51 = math.exp %50 : vector<2x128xf32>
    %cst_14 = arith.constant 1.000000e+00 : f32
    %52 = vector.broadcast %cst_14 : f32 to vector<2x128xf32>
    %53 = arith.addf %52, %51 : vector<2x128xf32>
    %54 = arith.divf %52, %53 : vector<2x128xf32>
    %55 = math.tanh %49 : vector<2x128xf32>
    %56 = vector.extract_strided_slice %54 {offsets = [0, 0], sizes = [2, 32], strides = [1, 1]} : vector<2x128xf32> to vector<2x32xf32>
    %57 = vector.extract_strided_slice %54 {offsets = [0, 32], sizes = [2, 32], strides = [1, 1]} : vector<2x128xf32> to vector<2x32xf32>
    %58 = vector.extract_strided_slice %55 {offsets = [0, 64], sizes = [2, 32], strides = [1, 1]} : vector<2x128xf32> to vector<2x32xf32>
    %59 = vector.extract_strided_slice %54 {offsets = [0, 96], sizes = [2, 32], strides = [1, 1]} : vector<2x128xf32> to vector<2x32xf32>
    %60 = arith.mulf %57, %44 : vector<2x32xf32>
    %61 = arith.mulf %56, %58 : vector<2x32xf32>
    %62 = arith.addf %60, %61 : vector<2x32xf32>
    %63 = math.tanh %62 : vector<2x32xf32>
    %64 = arith.mulf %59, %63 : vector<2x32xf32>
    %65 = vector.extract_strided_slice %8 {offsets = [6, 0], sizes = [2, 128], strides = [1, 1]} : vector<16x128xf32> to vector<2x128xf32>
    %cst_15 = arith.constant dense<0.000000e+00> : vector<2x128xf32>
    %66 = tpu.matmul %64, %1, %cst_15 {dimension_numbers = #tpu.dot_dimension_numbers<[1], [0], [0], [1], [0, 0, 1, 1], [], []>} : vector<2x32xf32>, vector<32x128xf32>, vector<2x128xf32> -> vector<2x128xf32>
    %67 = arith.addf %65, %66 : vector<2x128xf32>
    %68 = arith.negf %67 : vector<2x128xf32>
    %69 = math.exp %68 : vector<2x128xf32>
    %cst_16 = arith.constant 1.000000e+00 : f32
    %70 = vector.broadcast %cst_16 : f32 to vector<2x128xf32>
    %71 = arith.addf %70, %69 : vector<2x128xf32>
    %72 = arith.divf %70, %71 : vector<2x128xf32>
    %73 = math.tanh %67 : vector<2x128xf32>
    %74 = vector.extract_strided_slice %72 {offsets = [0, 0], sizes = [2, 32], strides = [1, 1]} : vector<2x128xf32> to vector<2x32xf32>
    %75 = vector.extract_strided_slice %72 {offsets = [0, 32], sizes = [2, 32], strides = [1, 1]} : vector<2x128xf32> to vector<2x32xf32>
    %76 = vector.extract_strided_slice %73 {offsets = [0, 64], sizes = [2, 32], strides = [1, 1]} : vector<2x128xf32> to vector<2x32xf32>
    %77 = vector.extract_strided_slice %72 {offsets = [0, 96], sizes = [2, 32], strides = [1, 1]} : vector<2x128xf32> to vector<2x32xf32>
    %78 = arith.mulf %75, %62 : vector<2x32xf32>
    %79 = arith.mulf %74, %76 : vector<2x32xf32>
    %80 = arith.addf %78, %79 : vector<2x32xf32>
    %81 = math.tanh %80 : vector<2x32xf32>
    %82 = arith.mulf %77, %81 : vector<2x32xf32>
    %83 = vector.extract_strided_slice %8 {offsets = [8, 0], sizes = [2, 128], strides = [1, 1]} : vector<16x128xf32> to vector<2x128xf32>
    %cst_17 = arith.constant dense<0.000000e+00> : vector<2x128xf32>
    %84 = tpu.matmul %82, %1, %cst_17 {dimension_numbers = #tpu.dot_dimension_numbers<[1], [0], [0], [1], [0, 0, 1, 1], [], []>} : vector<2x32xf32>, vector<32x128xf32>, vector<2x128xf32> -> vector<2x128xf32>
    %85 = arith.addf %83, %84 : vector<2x128xf32>
    %86 = arith.negf %85 : vector<2x128xf32>
    %87 = math.exp %86 : vector<2x128xf32>
    %cst_18 = arith.constant 1.000000e+00 : f32
    %88 = vector.broadcast %cst_18 : f32 to vector<2x128xf32>
    %89 = arith.addf %88, %87 : vector<2x128xf32>
    %90 = arith.divf %88, %89 : vector<2x128xf32>
    %91 = math.tanh %85 : vector<2x128xf32>
    %92 = vector.extract_strided_slice %90 {offsets = [0, 0], sizes = [2, 32], strides = [1, 1]} : vector<2x128xf32> to vector<2x32xf32>
    %93 = vector.extract_strided_slice %90 {offsets = [0, 32], sizes = [2, 32], strides = [1, 1]} : vector<2x128xf32> to vector<2x32xf32>
    %94 = vector.extract_strided_slice %91 {offsets = [0, 64], sizes = [2, 32], strides = [1, 1]} : vector<2x128xf32> to vector<2x32xf32>
    %95 = vector.extract_strided_slice %90 {offsets = [0, 96], sizes = [2, 32], strides = [1, 1]} : vector<2x128xf32> to vector<2x32xf32>
    %96 = arith.mulf %93, %80 : vector<2x32xf32>
    %97 = arith.mulf %92, %94 : vector<2x32xf32>
    %98 = arith.addf %96, %97 : vector<2x32xf32>
    %99 = math.tanh %98 : vector<2x32xf32>
    %100 = arith.mulf %95, %99 : vector<2x32xf32>
    %101 = vector.extract_strided_slice %8 {offsets = [10, 0], sizes = [2, 128], strides = [1, 1]} : vector<16x128xf32> to vector<2x128xf32>
    %cst_19 = arith.constant dense<0.000000e+00> : vector<2x128xf32>
    %102 = tpu.matmul %100, %1, %cst_19 {dimension_numbers = #tpu.dot_dimension_numbers<[1], [0], [0], [1], [0, 0, 1, 1], [], []>} : vector<2x32xf32>, vector<32x128xf32>, vector<2x128xf32> -> vector<2x128xf32>
    %103 = arith.addf %101, %102 : vector<2x128xf32>
    %104 = arith.negf %103 : vector<2x128xf32>
    %105 = math.exp %104 : vector<2x128xf32>
    %cst_20 = arith.constant 1.000000e+00 : f32
    %106 = vector.broadcast %cst_20 : f32 to vector<2x128xf32>
    %107 = arith.addf %106, %105 : vector<2x128xf32>
    %108 = arith.divf %106, %107 : vector<2x128xf32>
    %109 = math.tanh %103 : vector<2x128xf32>
    %110 = vector.extract_strided_slice %108 {offsets = [0, 0], sizes = [2, 32], strides = [1, 1]} : vector<2x128xf32> to vector<2x32xf32>
    %111 = vector.extract_strided_slice %108 {offsets = [0, 32], sizes = [2, 32], strides = [1, 1]} : vector<2x128xf32> to vector<2x32xf32>
    %112 = vector.extract_strided_slice %109 {offsets = [0, 64], sizes = [2, 32], strides = [1, 1]} : vector<2x128xf32> to vector<2x32xf32>
    %113 = vector.extract_strided_slice %108 {offsets = [0, 96], sizes = [2, 32], strides = [1, 1]} : vector<2x128xf32> to vector<2x32xf32>
    %114 = arith.mulf %111, %98 : vector<2x32xf32>
    %115 = arith.mulf %110, %112 : vector<2x32xf32>
    %116 = arith.addf %114, %115 : vector<2x32xf32>
    %117 = math.tanh %116 : vector<2x32xf32>
    %118 = arith.mulf %113, %117 : vector<2x32xf32>
    %119 = vector.extract_strided_slice %8 {offsets = [12, 0], sizes = [2, 128], strides = [1, 1]} : vector<16x128xf32> to vector<2x128xf32>
    %cst_21 = arith.constant dense<0.000000e+00> : vector<2x128xf32>
    %120 = tpu.matmul %118, %1, %cst_21 {dimension_numbers = #tpu.dot_dimension_numbers<[1], [0], [0], [1], [0, 0, 1, 1], [], []>} : vector<2x32xf32>, vector<32x128xf32>, vector<2x128xf32> -> vector<2x128xf32>
    %121 = arith.addf %119, %120 : vector<2x128xf32>
    %122 = arith.negf %121 : vector<2x128xf32>
    %123 = math.exp %122 : vector<2x128xf32>
    %cst_22 = arith.constant 1.000000e+00 : f32
    %124 = vector.broadcast %cst_22 : f32 to vector<2x128xf32>
    %125 = arith.addf %124, %123 : vector<2x128xf32>
    %126 = arith.divf %124, %125 : vector<2x128xf32>
    %127 = math.tanh %121 : vector<2x128xf32>
    %128 = vector.extract_strided_slice %126 {offsets = [0, 0], sizes = [2, 32], strides = [1, 1]} : vector<2x128xf32> to vector<2x32xf32>
    %129 = vector.extract_strided_slice %126 {offsets = [0, 32], sizes = [2, 32], strides = [1, 1]} : vector<2x128xf32> to vector<2x32xf32>
    %130 = vector.extract_strided_slice %127 {offsets = [0, 64], sizes = [2, 32], strides = [1, 1]} : vector<2x128xf32> to vector<2x32xf32>
    %131 = vector.extract_strided_slice %126 {offsets = [0, 96], sizes = [2, 32], strides = [1, 1]} : vector<2x128xf32> to vector<2x32xf32>
    %132 = arith.mulf %129, %116 : vector<2x32xf32>
    %133 = arith.mulf %128, %130 : vector<2x32xf32>
    %134 = arith.addf %132, %133 : vector<2x32xf32>
    %135 = math.tanh %134 : vector<2x32xf32>
    %136 = arith.mulf %131, %135 : vector<2x32xf32>
    %137 = vector.extract_strided_slice %8 {offsets = [14, 0], sizes = [2, 128], strides = [1, 1]} : vector<16x128xf32> to vector<2x128xf32>
    %cst_23 = arith.constant dense<0.000000e+00> : vector<2x128xf32>
    %138 = tpu.matmul %136, %1, %cst_23 {dimension_numbers = #tpu.dot_dimension_numbers<[1], [0], [0], [1], [0, 0, 1, 1], [], []>} : vector<2x32xf32>, vector<32x128xf32>, vector<2x128xf32> -> vector<2x128xf32>
    %139 = arith.addf %137, %138 : vector<2x128xf32>
    %140 = arith.negf %139 : vector<2x128xf32>
    %141 = math.exp %140 : vector<2x128xf32>
    %cst_24 = arith.constant 1.000000e+00 : f32
    %142 = vector.broadcast %cst_24 : f32 to vector<2x128xf32>
    %143 = arith.addf %142, %141 : vector<2x128xf32>
    %144 = arith.divf %142, %143 : vector<2x128xf32>
    %145 = math.tanh %139 : vector<2x128xf32>
    %146 = vector.extract_strided_slice %144 {offsets = [0, 0], sizes = [2, 32], strides = [1, 1]} : vector<2x128xf32> to vector<2x32xf32>
    %147 = vector.extract_strided_slice %144 {offsets = [0, 32], sizes = [2, 32], strides = [1, 1]} : vector<2x128xf32> to vector<2x32xf32>
    %148 = vector.extract_strided_slice %145 {offsets = [0, 64], sizes = [2, 32], strides = [1, 1]} : vector<2x128xf32> to vector<2x32xf32>
    %149 = vector.extract_strided_slice %144 {offsets = [0, 96], sizes = [2, 32], strides = [1, 1]} : vector<2x128xf32> to vector<2x32xf32>
    %150 = arith.mulf %147, %134 : vector<2x32xf32>
    %151 = arith.mulf %146, %148 : vector<2x32xf32>
    %152 = arith.addf %150, %151 : vector<2x32xf32>
    %153 = math.tanh %152 : vector<2x32xf32>
    %154 = arith.mulf %149, %153 : vector<2x32xf32>
    %155 = tpu.concatenate %28, %46, %64, %82, %100, %118, %136, %154 in 0 : vector<2x32xf32>, vector<2x32xf32>, vector<2x32xf32>, vector<2x32xf32>, vector<2x32xf32>, vector<2x32xf32>, vector<2x32xf32>, vector<2x32xf32> -> vector<16x32xf32>
    %156 = vector.broadcast %3 : vector<1x32xf32> to vector<16x32xf32>
    %157 = arith.mulf %155, %156 : vector<16x32xf32>
    %cst_25 = arith.constant dense<0.000000e+00> : vector<16xf32>
    %158 = vector.multi_reduction <add>, %157, %cst_25 [1] : vector<16x32xf32> to vector<16xf32>
    %159 = vector.shape_cast %158 : vector<16xf32> to vector<16x1xf32>
    %160 = vector.broadcast %4 : vector<1x1xf32> to vector<16x1xf32>
    %161 = arith.addf %159, %160 : vector<16x1xf32>
    %cst_26 = arith.constant 5.000000e-01 : f32
    %162 = vector.broadcast %cst_26 : f32 to vector<16x1xf32>
    %163 = arith.mulf %161, %162 : vector<16x1xf32>
    %164 = math.tanh %163 : vector<16x1xf32>
    %cst_27 = arith.constant 5.000000e+00 : f32
    %165 = vector.broadcast %cst_27 : f32 to vector<16x1xf32>
    %166 = arith.mulf %165, %164 : vector<16x1xf32>
    %c0_28 = arith.constant 0 : index
    %c0_29 = arith.constant 0 : index
    %167 = vector.load %arg2[%c0_28, %c0_29] : memref<16x1xf32, #tpu.memory_space<vmem>>, vector<16x1xf32>
    tpu.vector_store %arg2[%c0_28, %c0_29], %166 {strides = array<i32>} : memref<16x1xf32, #tpu.memory_space<vmem>>, vector<16x1xf32>,
    return
  }
}

</mosaic_0001>

<llo_original>
// kernel: tpu_custom_call.1
$region0: #{tpu_custom_call.1}
  #allocation0 [shape = 'u32[]', space=smem, size = 0x4, offset = 0x4, fixed_abs, tag = 'smem constant byte address 0x4 - core index']
  #allocation1 [shape = 'u32[144,128]{1,0:T(1,128)}', space=vmem, size = 0x12000, scoped, tag = 'internal scratch']
  %s0 = inlined_call_operand.hbm [shape: f32[16,16], index: 0, kind: input, shape index: {}]
  %s1 = inlined_call_operand.hbm [shape: f32[50,128], index: 1, kind: input, shape index: {}]
  %s2 = inlined_call_operand.vmem [shape: f32[16,1], index: 2, kind: output, shape index: {}]
  %s3 = sld [smem:[#allocation0]]
  $region26: #{tpu_custom_call.1} parent=0
    _
  %s5 = ssub.s32 1, %s3
  %s6 = scalar_select 0, %s5, %s3
  $region1: #{tpu_custom_call.1} parent=0
    #allocation2 [shape = 'u8[8192]{0}', space=vmem, size = 0x2000, scoped, tag = 'input window, operand 0, single buffered']
    #allocation3 [shape = 's32[1]{0}', space=sflag, size = 0x4, scoped, tag = 'scoped memory for tpu_custom_call.1']
    #allocation4 [shape = 'u8[28672]{0}', space=vmem, size = 0x7000, scoped, tag = 'input window, operand 1, single buffered']
    #allocation5 [shape = 's32[1]{0}', space=sflag, size = 0x4, scoped, tag = 'scoped memory for tpu_custom_call.1']
    %7 = vsyncpa [#allocation3], 0
    %8 = vsyncpa [#allocation5], 0
    // Predicated region
    $region2: #{tpu_custom_call.1} parent=1 // pred_check
      _
    $region3: #{tpu_custom_call.1} parent=1 // pred_check_branch
      %10 = sbr.rel (0) target = $region5
    $region4: #{tpu_custom_call.1} parent=1 // pred_region
      %s12 = ssub.s32 256, 256
      %13 = vsyncadd [#allocation3], %s12
      %s14 = sshll.u32 [#allocation2], 4
      %s15 = int_to_ptr.vmem [resolvable:$true] %s14
      %20 = dma.hbm_to_vmem [thread:$0]  %s0, 256, %s15, [#allocation3], 128, 128, 8
    $region5: #{tpu_custom_call.1} parent=1 // pred_fallthru
      _
    // Predicated region
    $region6: #{tpu_custom_call.1} parent=1 // pred_check
      _
    $region7: #{tpu_custom_call.1} parent=1 // pred_check_branch
      %22 = sbr.rel (0) target = $region9
    $region8: #{tpu_custom_call.1} parent=1 // pred_region
      %s24 = ssub.s32 896, 896
      %25 = vsyncadd [#allocation5], %s24
      %s26 = sshll.u32 [#allocation4], 4
      %s27 = int_to_ptr.vmem [resolvable:$true] %s26
      %32 = dma.hbm_to_vmem [thread:$0]  %s1, 896, %s27, [#allocation5], 128, 128, 8
    $region9: #{tpu_custom_call.1} parent=1 // pred_fallthru
      _
    // Predicated region
    $region10: #{tpu_custom_call.1} parent=1 // pred_check
      _
    $region11: #{tpu_custom_call.1} parent=1 // pred_check_branch
      %34 = sbr.rel (0) target = $region13
    $region12: #{tpu_custom_call.1} parent=1 // pred_region
      %35 = dma.done [#allocation3], 256
    $region13: #{tpu_custom_call.1} parent=1 // pred_fallthru
      _
    // Predicated region
    $region14: #{tpu_custom_call.1} parent=1 // pred_check
      _
    $region15: #{tpu_custom_call.1} parent=1 // pred_check_branch
      %37 = sbr.rel (0) target = $region17
    $region16: #{tpu_custom_call.1} parent=1 // pred_region
      %38 = dma.done [#allocation5], 896
    $region17: #{tpu_custom_call.1} parent=1 // pred_fallthru
      _
    %v39 = vld [vmem:[#allocation4] sm:$0xff]
    %v40 = vld [vmem:[#allocation4 + $0x8] sm:$0xff]
    %v41 = vld [vmem:[#allocation4 + $0x10] sm:$0xff]
    %v42 = vld [vmem:[#allocation4 + $0x18] sm:$0xff]
    %v43 = vld [vmem:[#allocation4 + $0x20] sm:$0xff]
    %v44 = vld [vmem:[#allocation4 + $0x28] sm:$0xff]
    %v45 = vld [vmem:[#allocation4 + $0x30] sm:$0x1]
    %v46 = vld [vmem:[#allocation4 + $0x31] sm:$0x1]
    %v47 = vld [vmem:[#allocation2] sm:$0xff]
    %v48 = vld [vmem:[#allocation2 + $0x8] sm:$0xff]
    %v49 = vlaneseq
    %v50 = vshrl.u32 %v49, 7
    %v51 = vsub.s32 0, %v50
    %v52 = vrot.slane %v45, %v51
    %vm53 = vcmask 130048
    %v55 = vsel %vm53, %v47, 0
    %v58 = vsel %vm53, %v48, 0
    %60 = vmatprep.subr.mxu0 0.0
    %61 = vmatpush1.msra.mxu0 %v39
    %62 = vmatprep.subr.mxu0 0.0
    %63 = vmatpush1.msra.mxu0 %v40
    %64 = vmatprep.subr.mxu0 0.0
    %65 = vmatpush1.msra.mxu0 0.0
    %66 = vmatprep.subr.mxu0 0.0
    %67 = vmatpush1.msra.mxu0 0.0
    %68 = vmatprep.subr.mxu0 0.0
    %69 = vmatpush1.msra.mxu0 0.0
    %70 = vmatprep.subr.mxu0 0.0
    %71 = vmatpush1.msra.mxu0 0.0
    %72 = vmatprep.subr.mxu0 0.0
    %73 = vmatpush1.msra.mxu0 0.0
    %74 = vmatprep.subr.mxu0 0.0
    %75 = vmatpush1.msra.mxu0 0.0
    %76 = vmatprep.subr.mxu0 0.0
    %77 = vmatpush1.msra.mxu0 0.0
    %78 = vmatprep.subr.mxu0 0.0
    %79 = vmatpush1.msra.mxu0 0.0
    %80 = vmatprep.subr.mxu0 0.0
    %81 = vmatpush1.msra.mxu0 0.0
    %82 = vmatprep.subr.mxu0 0.0
    %83 = vmatpush1.msra.mxu0 0.0
    %84 = vmatprep.subr.mxu0 0.0
    %85 = vmatpush1.msra.mxu0 0.0
    %86 = vmatprep.subr.mxu0 0.0
    %87 = vmatpush1.msra.mxu0 0.0
    %88 = vmatprep.subr.mxu0 0.0
    %89 = vmatpush1.msra.mxu0 0.0
    %90 = vmatprep.subr.mxu0 0.0
    %91 = vmatpush1.msra.mxu0 0.0
    %92 = vmatprep.subr.mxu0 0.0
    %93 = vmatpush1.msra.mxu0 0.0
    %94 = vmatprep.subr.mxu0 0.0
    %95 = vmatpush1.msra.mxu0 0.0
    %96 = vmatprep.subr.mxu0 0.0
    %97 = vmatpush1.msra.mxu0 0.0
    %98 = vmatprep.subr.mxu0 0.0
    %99 = vmatpush1.msra.mxu0 0.0
    %100 = vmatprep.subr.mxu0 0.0
    %101 = vmatpush1.msra.mxu0 0.0
    %102 = vmatprep.subr.mxu0 0.0
    %103 = vmatpush1.msra.mxu0 0.0
    %104 = vmatprep.subr.mxu0 0.0
    %105 = vmatpush1.msra.mxu0 0.0
    %106 = vmatprep.subr.mxu0 0.0
    %107 = vmatpush1.msra.mxu0 0.0
    %108 = vmatprep.subr.mxu0 0.0
    %109 = vmatpush1.msra.mxu0 0.0
    %110 = vmatprep.subr.mxu0 0.0
    %111 = vmatpush1.msra.mxu0 0.0
    %112 = vmatprep.subr.mxu0 0.0
    %113 = vmatpush1.msra.mxu0 0.0
    %114 = vmatprep.subr.mxu0 0.0
    %115 = vmatpush1.msra.mxu0 0.0
    %116 = vmatprep.subr.mxu0 0.0
    %117 = vmatpush1.msra.mxu0 0.0
    %118 = vmatprep.subr.mxu0 0.0
    %119 = vmatpush1.msra.mxu0 0.0
    %120 = vmatprep.subr.mxu0 0.0
    %121 = vmatpush1.msra.mxu0 0.0
    %122 = vmatprep.subr.mxu0 0.0
    %123 = vmatpush1.msra.mxu0 0.0
    %124 = vmatprep.mubr.f32.mxu0 0.0
    %125 = vmatmul.mubr.f32.gmra.mrb[0].mxu0 %v55
    %v126 = vpop.f32.mrb[0].mxu0
    %v127 = vadd.f32 %v52, %v126
    %v128 = vpop.f32.mrb[0].mxu0
    %129 = vmatprep.mubr.f32.mxu0 0.0
    %130 = vmatmul.mubr.f32.gmra.mrb[0].mxu0 %v58
    %v131 = vpop.f32.mrb[0].mxu0
    %v132 = vadd.f32 %v52, %v131
    %v133 = vpop.f32.mrb[0].mxu0
    %134 = vdwg.mxu0
    %vm135 = vcmask 261120
    %v137 = vsel %vm135, 0.0, 0
    %139 = vmatprep.subr.mxu0 0.0
    %140 = vmatpush1.msra.mxu0 %v41
    %141 = vmatprep.subr.mxu0 0.0
    %142 = vmatpush1.msra.mxu0 %v42
    %143 = vmatprep.subr.mxu0 0.0
    %144 = vmatpush1.msra.mxu0 %v43
    %145 = vmatprep.subr.mxu0 0.0
    %146 = vmatpush1.msra.mxu0 %v44
    %147 = vmatprep.subr.mxu0 0.0
    %148 = vmatpush1.msra.mxu0 0.0
    %149 = vmatprep.subr.mxu0 0.0
    %150 = vmatpush1.msra.mxu0 0.0
    %151 = vmatprep.subr.mxu0 0.0
    %152 = vmatpush1.msra.mxu0 0.0
    %153 = vmatprep.subr.mxu0 0.0
    %154 = vmatpush1.msra.mxu0 0.0
    %155 = vmatprep.subr.mxu0 0.0
    %156 = vmatpush1.msra.mxu0 0.0
    %157 = vmatprep.subr.mxu0 0.0
    %158 = vmatpush1.msra.mxu0 0.0
    %159 = vmatprep.subr.mxu0 0.0
    %160 = vmatpush1.msra.mxu0 0.0
    %161 = vmatprep.subr.mxu0 0.0
    %162 = vmatpush1.msra.mxu0 0.0
    %163 = vmatprep.subr.mxu0 0.0
    %164 = vmatpush1.msra.mxu0 0.0
    %165 = vmatprep.subr.mxu0 0.0
    %166 = vmatpush1.msra.mxu0 0.0
    %167 = vmatprep.subr.mxu0 0.0
    %168 = vmatpush1.msra.mxu0 0.0
    %169 = vmatprep.subr.mxu0 0.0
    %170 = vmatpush1.msra.mxu0 0.0
    %171 = vmatprep.subr.mxu0 0.0
    %172 = vmatpush1.msra.mxu0 0.0
    %173 = vmatprep.subr.mxu0 0.0
    %174 = vmatpush1.msra.mxu0 0.0
    %175 = vmatprep.subr.mxu0 0.0
    %176 = vmatpush1.msra.mxu0 0.0
    %177 = vmatprep.subr.mxu0 0.0
    %178 = vmatpush1.msra.mxu0 0.0
    %179 = vmatprep.subr.mxu0 0.0
    %180 = vmatpush1.msra.mxu0 0.0
    %181 = vmatprep.subr.mxu0 0.0
    %182 = vmatpush1.msra.mxu0 0.0
    %183 = vmatprep.subr.mxu0 0.0
    %184 = vmatpush1.msra.mxu0 0.0
    %185 = vmatprep.subr.mxu0 0.0
    %186 = vmatpush1.msra.mxu0 0.0
    %187 = vmatprep.subr.mxu0 0.0
    %188 = vmatpush1.msra.mxu0 0.0
    %189 = vmatprep.subr.mxu0 0.0
    %190 = vmatpush1.msra.mxu0 0.0
    %191 = vmatprep.subr.mxu0 0.0
    %192 = vmatpush1.msra.mxu0 0.0
    %193 = vmatprep.subr.mxu0 0.0
    %194 = vmatpush1.msra.mxu0 0.0
    %195 = vmatprep.subr.mxu0 0.0
    %196 = vmatpush1.msra.mxu0 0.0
    %197 = vmatprep.subr.mxu0 0.0
    %198 = vmatpush1.msra.mxu0 0.0
    %199 = vmatprep.subr.mxu0 0.0
    %200 = vmatpush1.msra.mxu0 0.0
    %201 = vmatprep.subr.mxu0 0.0
    %202 = vmatpush1.msra.mxu0 0.0
    %203 = vmatprep.mubr.f32.mxu0 0.0
    %204 = vmatmul.mubr.f32.gmra.mrb[0].mxu0 %v137
    %v205 = vpop.f32.mrb[0].mxu0
    %v206 = vadd.f32 0.0, %v205
    %v207 = vpop.f32.mrb[0].mxu0
    %208 = vdwg.mxu0
    %v209 = vadd.f32 %v127, %v206
    %v210 = vxor.u32 %v209, 2147483648
    %v211 = vmul.f32 %v210, 1.442695
    %v212 = vpow.pop %v211
    %v213 = vadd.f32 %v212, 1.0
    %v214 = vrcp.pop %v213
    %v215 = vmul.f32 1.0, %v214
    %v216 = vtanh.pop %v209
    %v217 = vmul.f32 %v215, 0.0
    %219 = vrot.lane.b32.xlu0 %v216, 64
    %v220 = vpop.permute.xlu0 %219
    %v222 = vmul.f32 %v215, %v220
    %224 = vrot.lane.b32.xlu0 %v222, 32
    %v225 = vpop.permute.xlu0 %224
    %v227 = vadd.f32 %v217, %v225
    %v228 = vtanh.pop %v227
    %230 = vrot.lane.b32.xlu0 %v228, 64
    %v231 = vpop.permute.xlu0 %230
    %v233 = vmul.f32 %v215, %v231
    %235 = vrot.lane.b32.xlu0 %v233, 32
    %v236 = vpop.permute.xlu0 %235
    %v237 = vsel %vm135, %v236, 0
    %239 = vmatprep.subr.mxu0 0.0
    %240 = vmatpush1.msra.mxu0 %v41
    %241 = vmatprep.subr.mxu0 0.0
    %242 = vmatpush1.msra.mxu0 %v42
    %243 = vmatprep.subr.mxu0 0.0
    %244 = vmatpush1.msra.mxu0 %v43
    %245 = vmatprep.subr.mxu0 0.0
    %246 = vmatpush1.msra.mxu0 %v44
    %247 = vmatprep.subr.mxu0 0.0
    %248 = vmatpush1.msra.mxu0 0.0
    %249 = vmatprep.subr.mxu0 0.0
    %250 = vmatpush1.msra.mxu0 0.0
    %251 = vmatprep.subr.mxu0 0.0
    %252 = vmatpush1.msra.mxu0 0.0
    %253 = vmatprep.subr.mxu0 0.0
    %254 = vmatpush1.msra.mxu0 0.0
    %255 = vmatprep.subr.mxu0 0.0
    %256 = vmatpush1.msra.mxu0 0.0
    %257 = vmatprep.subr.mxu0 0.0
    %258 = vmatpush1.msra.mxu0 0.0
    %259 = vmatprep.subr.mxu0 0.0
    %260 = vmatpush1.msra.mxu0 0.0
    %261 = vmatprep.subr.mxu0 0.0
    %262 = vmatpush1.msra.mxu0 0.0
    %263 = vmatprep.subr.mxu0 0.0
    %264 = vmatpush1.msra.mxu0 0.0
    %265 = vmatprep.subr.mxu0 0.0
    %266 = vmatpush1.msra.mxu0 0.0
    %267 = vmatprep.subr.mxu0 0.0
    %268 = vmatpush1.msra.mxu0 0.0
    %269 = vmatprep.subr.mxu0 0.0
    %270 = vmatpush1.msra.mxu0 0.0
    %271 = vmatprep.subr.mxu0 0.0
    %272 = vmatpush1.msra.mxu0 0.0
    %273 = vmatprep.subr.mxu0 0.0
    %274 = vmatpush1.msra.mxu0 0.0
    %275 = vmatprep.subr.mxu0 0.0
    %276 = vmatpush1.msra.mxu0 0.0
    %277 = vmatprep.subr.mxu0 0.0
    %278 = vmatpush1.msra.mxu0 0.0
    %279 = vmatprep.subr.mxu0 0.0
    %280 = vmatpush1.msra.mxu0 0.0
    %281 = vmatprep.subr.mxu0 0.0
    %282 = vmatpush1.msra.mxu0 0.0
    %283 = vmatprep.subr.mxu0 0.0
    %284 = vmatpush1.msra.mxu0 0.0
    %285 = vmatprep.subr.mxu0 0.0
    %286 = vmatpush1.msra.mxu0 0.0
    %287 = vmatprep.subr.mxu0 0.0
    %288 = vmatpush1.msra.mxu0 0.0
    %289 = vmatprep.subr.mxu0 0.0
    %290 = vmatpush1.msra.mxu0 0.0
    %291 = vmatprep.subr.mxu0 0.0
    %292 = vmatpush1.msra.mxu0 0.0
    %293 = vmatprep.subr.mxu0 0.0
    %294 = vmatpush1.msra.mxu0 0.0
    %295 = vmatprep.subr.mxu0 0.0
    %296 = vmatpush1.msra.mxu0 0.0
    %297 = vmatprep.subr.mxu0 0.0
    %298 = vmatpush1.msra.mxu0 0.0
    %299 = vmatprep.subr.mxu0 0.0
    %300 = vmatpush1.msra.mxu0 0.0
    %301 = vmatprep.subr.mxu0 0.0
    %302 = vmatpush1.msra.mxu0 0.0
    %303 = vmatprep.mubr.f32.mxu0 0.0
    %304 = vmatmul.mubr.f32.gmra.mrb[0].mxu0 %v237
    %v305 = vpop.f32.mrb[0].mxu0
    %v306 = vadd.f32 0.0, %v305
    %v307 = vpop.f32.mrb[0].mxu0
    %308 = vdwg.mxu0
    %v310 = vrot.slane %v306, 6
    %v312 = vadd.f32 %v127, %v310
    %v313 = vxor.u32 %v312, 2147483648
    %v314 = vmul.f32 %v313, 1.442695
    %v315 = vpow.pop %v314
    %v316 = vadd.f32 %v315, 1.0
    %v317 = vrcp.pop %v316
    %v318 = vmul.f32 1.0, %v317
    %v319 = vtanh.pop %v312
    %v321 = vrot.slane %v227, 6
    %v323 = vmul.f32 %v318, %v321
    %325 = vrot.lane.b32.xlu0 %v319, 64
    %v326 = vpop.permute.xlu0 %325
    %v328 = vmul.f32 %v318, %v326
    %330 = vrot.lane.b32.xlu0 %v328, 32
    %v331 = vpop.permute.xlu0 %330
    %v333 = vadd.f32 %v323, %v331
    %v334 = vtanh.pop %v333
    %336 = vrot.lane.b32.xlu0 %v334, 64
    %v337 = vpop.permute.xlu0 %336
    %v339 = vmul.f32 %v318, %v337
    %v341 = vrot.slane %v339, 2
    %342 = vrot.lane.b32.xlu0 %v341, 32
    %v343 = vpop.permute.xlu0 %342
    %v344 = vsel %vm135, %v343, 0
    %346 = vmatprep.subr.mxu0 0.0
    %347 = vmatpush1.msra.mxu0 %v41
    %348 = vmatprep.subr.mxu0 0.0
    %349 = vmatpush1.msra.mxu0 %v42
    %350 = vmatprep.subr.mxu0 0.0
    %351 = vmatpush1.msra.mxu0 %v43
    %352 = vmatprep.subr.mxu0 0.0
    %353 = vmatpush1.msra.mxu0 %v44
    %354 = vmatprep.subr.mxu0 0.0
    %355 = vmatpush1.msra.mxu0 0.0
    %356 = vmatprep.subr.mxu0 0.0
    %357 = vmatpush1.msra.mxu0 0.0
    %358 = vmatprep.subr.mxu0 0.0
    %359 = vmatpush1.msra.mxu0 0.0
    %360 = vmatprep.subr.mxu0 0.0
    %361 = vmatpush1.msra.mxu0 0.0
    %362 = vmatprep.subr.mxu0 0.0
    %363 = vmatpush1.msra.mxu0 0.0
    %364 = vmatprep.subr.mxu0 0.0
    %365 = vmatpush1.msra.mxu0 0.0
    %366 = vmatprep.subr.mxu0 0.0
    %367 = vmatpush1.msra.mxu0 0.0
    %368 = vmatprep.subr.mxu0 0.0
    %369 = vmatpush1.msra.mxu0 0.0
    %370 = vmatprep.subr.mxu0 0.0
    %371 = vmatpush1.msra.mxu0 0.0
    %372 = vmatprep.subr.mxu0 0.0
    %373 = vmatpush1.msra.mxu0 0.0
    %374 = vmatprep.subr.mxu0 0.0
    %375 = vmatpush1.msra.mxu0 0.0
    %376 = vmatprep.subr.mxu0 0.0
    %377 = vmatpush1.msra.mxu0 0.0
    %378 = vmatprep.subr.mxu0 0.0
    %379 = vmatpush1.msra.mxu0 0.0
    %380 = vmatprep.subr.mxu0 0.0
    %381 = vmatpush1.msra.mxu0 0.0
    %382 = vmatprep.subr.mxu0 0.0
    %383 = vmatpush1.msra.mxu0 0.0
    %384 = vmatprep.subr.mxu0 0.0
    %385 = vmatpush1.msra.mxu0 0.0
    %386 = vmatprep.subr.mxu0 0.0
    %387 = vmatpush1.msra.mxu0 0.0
    %388 = vmatprep.subr.mxu0 0.0
    %389 = vmatpush1.msra.mxu0 0.0
    %390 = vmatprep.subr.mxu0 0.0
    %391 = vmatpush1.msra.mxu0 0.0
    %392 = vmatprep.subr.mxu0 0.0
    %393 = vmatpush1.msra.mxu0 0.0
    %394 = vmatprep.subr.mxu0 0.0
    %395 = vmatpush1.msra.mxu0 0.0
    %396 = vmatprep.subr.mxu0 0.0
    %397 = vmatpush1.msra.mxu0 0.0
    %398 = vmatprep.subr.mxu0 0.0
    %399 = vmatpush1.msra.mxu0 0.0
    %400 = vmatprep.subr.mxu0 0.0
    %401 = vmatpush1.msra.mxu0 0.0
    %402 = vmatprep.subr.mxu0 0.0
    %403 = vmatpush1.msra.mxu0 0.0
    %404 = vmatprep.subr.mxu0 0.0
    %405 = vmatpush1.msra.mxu0 0.0
    %406 = vmatprep.subr.mxu0 0.0
    %407 = vmatpush1.msra.mxu0 0.0
    %408 = vmatprep.subr.mxu0 0.0
    %409 = vmatpush1.msra.mxu0 0.0
    %410 = vmatprep.mubr.f32.mxu0 0.0
    %411 = vmatmul.mubr.f32.gmra.mrb[0].mxu0 %v344
    %v412 = vpop.f32.mrb[0].mxu0
    %v413 = vadd.f32 0.0, %v412
    %v414 = vpop.f32.mrb[0].mxu0
    %415 = vdwg.mxu0
    %v417 = vrot.slane %v413, 4
    %v419 = vadd.f32 %v127, %v417
    %v420 = vxor.u32 %v419, 2147483648
    %v421 = vmul.f32 %v420, 1.442695
    %v422 = vpow.pop %v421
    %v423 = vadd.f32 %v422, 1.0
    %v424 = vrcp.pop %v423
    %v425 = vmul.f32 1.0, %v424
    %v426 = vtanh.pop %v419
    %v428 = vrot.slane %v333, 6
    %v430 = vmul.f32 %v425, %v428
    %432 = vrot.lane.b32.xlu0 %v426, 64
    %v433 = vpop.permute.xlu0 %432
    %v435 = vmul.f32 %v425, %v433
    %437 = vrot.lane.b32.xlu0 %v435, 32
    %v438 = vpop.permute.xlu0 %437
    %v440 = vadd.f32 %v430, %v438
    %v441 = vtanh.pop %v440
    %443 = vrot.lane.b32.xlu0 %v441, 64
    %v444 = vpop.permute.xlu0 %443
    %v446 = vmul.f32 %v425, %v444
    %v448 = vrot.slane %v446, 4
    %449 = vrot.lane.b32.xlu0 %v448, 32
    %v450 = vpop.permute.xlu0 %449
    %v451 = vsel %vm135, %v450, 0
    %453 = vmatprep.subr.mxu0 0.0
    %454 = vmatpush1.msra.mxu0 %v41
    %455 = vmatprep.subr.mxu0 0.0
    %456 = vmatpush1.msra.mxu0 %v42
    %457 = vmatprep.subr.mxu0 0.0
    %458 = vmatpush1.msra.mxu0 %v43
    %459 = vmatprep.subr.mxu0 0.0
    %460 = vmatpush1.msra.mxu0 %v44
    %461 = vmatprep.subr.mxu0 0.0
    %462 = vmatpush1.msra.mxu0 0.0
    %463 = vmatprep.subr.mxu0 0.0
    %464 = vmatpush1.msra.mxu0 0.0
    %465 = vmatprep.subr.mxu0 0.0
    %466 = vmatpush1.msra.mxu0 0.0
    %467 = vmatprep.subr.mxu0 0.0
    %468 = vmatpush1.msra.mxu0 0.0
    %469 = vmatprep.subr.mxu0 0.0
    %470 = vmatpush1.msra.mxu0 0.0
    %471 = vmatprep.subr.mxu0 0.0
    %472 = vmatpush1.msra.mxu0 0.0
    %473 = vmatprep.subr.mxu0 0.0
    %474 = vmatpush1.msra.mxu0 0.0
    %475 = vmatprep.subr.mxu0 0.0
    %476 = vmatpush1.msra.mxu0 0.0
    %477 = vmatprep.subr.mxu0 0.0
    %478 = vmatpush1.msra.mxu0 0.0
    %479 = vmatprep.subr.mxu0 0.0
    %480 = vmatpush1.msra.mxu0 0.0
    %481 = vmatprep.subr.mxu0 0.0
    %482 = vmatpush1.msra.mxu0 0.0
    %483 = vmatprep.subr.mxu0 0.0
    %484 = vmatpush1.msra.mxu0 0.0
    %485 = vmatprep.subr.mxu0 0.0
    %486 = vmatpush1.msra.mxu0 0.0
    %487 = vmatprep.subr.mxu0 0.0
    %488 = vmatpush1.msra.mxu0 0.0
    %489 = vmatprep.subr.mxu0 0.0
    %490 = vmatpush1.msra.mxu0 0.0
    %491 = vmatprep.subr.mxu0 0.0
    %492 = vmatpush1.msra.mxu0 0.0
    %493 = vmatprep.subr.mxu0 0.0
    %494 = vmatpush1.msra.mxu0 0.0
    %495 = vmatprep.subr.mxu0 0.0
    %496 = vmatpush1.msra.mxu0 0.0
    %497 = vmatprep.subr.mxu0 0.0
    %498 = vmatpush1.msra.mxu0 0.0
    %499 = vmatprep.subr.mxu0 0.0
    %500 = vmatpush1.msra.mxu0 0.0
    %501 = vmatprep.subr.mxu0 0.0
    %502 = vmatpush1.msra.mxu0 0.0
    %503 = vmatprep.subr.mxu0 0.0
    %504 = vmatpush1.msra.mxu0 0.0
    %505 = vmatprep.subr.mxu0 0.0
    %506 = vmatpush1.msra.mxu0 0.0
    %507 = vmatprep.subr.mxu0 0.0
    %508 = vmatpush1.msra.mxu0 0.0
    %509 = vmatprep.subr.mxu0 0.0
    %510 = vmatpush1.msra.mxu0 0.0
    %511 = vmatprep.subr.mxu0 0.0
    %512 = vmatpush1.msra.mxu0 0.0
    %513 = vmatprep.subr.mxu0 0.0
    %514 = vmatpush1.msra.mxu0 0.0
    %515 = vmatprep.subr.mxu0 0.0
    %516 = vmatpush1.msra.mxu0 0.0
    %517 = vmatprep.mubr.f32.mxu0 0.0
    %518 = vmatmul.mubr.f32.gmra.mrb[0].mxu0 %v451
    %v519 = vpop.f32.mrb[0].mxu0
    %v520 = vadd.f32 0.0, %v519
    %v521 = vpop.f32.mrb[0].mxu0
    %522 = vdwg.mxu0
    %v524 = vrot.slane %v520, 2
    %v526 = vadd.f32 %v127, %v524
    %v527 = vxor.u32 %v526, 2147483648
    %v528 = vmul.f32 %v527, 1.442695
    %v529 = vpow.pop %v528
    %v530 = vadd.f32 %v529, 1.0
    %v531 = vrcp.pop %v530
    %v532 = vmul.f32 1.0, %v531
    %v533 = vtanh.pop %v526
    %v535 = vrot.slane %v440, 6
    %v537 = vmul.f32 %v532, %v535
    %539 = vrot.lane.b32.xlu0 %v533, 64
    %v540 = vpop.permute.xlu0 %539
    %v542 = vmul.f32 %v532, %v540
    %544 = vrot.lane.b32.xlu0 %v542, 32
    %v545 = vpop.permute.xlu0 %544
    %v547 = vadd.f32 %v537, %v545
    %v548 = vtanh.pop %v547
    %550 = vrot.lane.b32.xlu0 %v548, 64
    %v551 = vpop.permute.xlu0 %550
    %v553 = vmul.f32 %v532, %v551
    %v555 = vrot.slane %v553, 6
    %556 = vrot.lane.b32.xlu0 %v555, 32
    %v557 = vpop.permute.xlu0 %556
    %v558 = vsel %vm135, %v557, 0
    %560 = vmatprep.subr.mxu0 0.0
    %561 = vmatpush1.msra.mxu0 %v41
    %562 = vmatprep.subr.mxu0 0.0
    %563 = vmatpush1.msra.mxu0 %v42
    %564 = vmatprep.subr.mxu0 0.0
    %565 = vmatpush1.msra.mxu0 %v43
    %566 = vmatprep.subr.mxu0 0.0
    %567 = vmatpush1.msra.mxu0 %v44
    %568 = vmatprep.subr.mxu0 0.0
    %569 = vmatpush1.msra.mxu0 0.0
    %570 = vmatprep.subr.mxu0 0.0
    %571 = vmatpush1.msra.mxu0 0.0
    %572 = vmatprep.subr.mxu0 0.0
    %573 = vmatpush1.msra.mxu0 0.0
    %574 = vmatprep.subr.mxu0 0.0
    %575 = vmatpush1.msra.mxu0 0.0
    %576 = vmatprep.subr.mxu0 0.0
    %577 = vmatpush1.msra.mxu0 0.0
    %578 = vmatprep.subr.mxu0 0.0
    %579 = vmatpush1.msra.mxu0 0.0
    %580 = vmatprep.subr.mxu0 0.0
    %581 = vmatpush1.msra.mxu0 0.0
    %582 = vmatprep.subr.mxu0 0.0
    %583 = vmatpush1.msra.mxu0 0.0
    %584 = vmatprep.subr.mxu0 0.0
    %585 = vmatpush1.msra.mxu0 0.0
    %586 = vmatprep.subr.mxu0 0.0
    %587 = vmatpush1.msra.mxu0 0.0
    %588 = vmatprep.subr.mxu0 0.0
    %589 = vmatpush1.msra.mxu0 0.0
    %590 = vmatprep.subr.mxu0 0.0
    %591 = vmatpush1.msra.mxu0 0.0
    %592 = vmatprep.subr.mxu0 0.0
    %593 = vmatpush1.msra.mxu0 0.0
    %594 = vmatprep.subr.mxu0 0.0
    %595 = vmatpush1.msra.mxu0 0.0
    %596 = vmatprep.subr.mxu0 0.0
    %597 = vmatpush1.msra.mxu0 0.0
    %598 = vmatprep.subr.mxu0 0.0
    %599 = vmatpush1.msra.mxu0 0.0
    %600 = vmatprep.subr.mxu0 0.0
    %601 = vmatpush1.msra.mxu0 0.0
    %602 = vmatprep.subr.mxu0 0.0
    %603 = vmatpush1.msra.mxu0 0.0
    %604 = vmatprep.subr.mxu0 0.0
    %605 = vmatpush1.msra.mxu0 0.0
    %606 = vmatprep.subr.mxu0 0.0
    %607 = vmatpush1.msra.mxu0 0.0
    %608 = vmatprep.subr.mxu0 0.0
    %609 = vmatpush1.msra.mxu0 0.0
    %610 = vmatprep.subr.mxu0 0.0
    %611 = vmatpush1.msra.mxu0 0.0
    %612 = vmatprep.subr.mxu0 0.0
    %613 = vmatpush1.msra.mxu0 0.0
    %614 = vmatprep.subr.mxu0 0.0
    %615 = vmatpush1.msra.mxu0 0.0
    %616 = vmatprep.subr.mxu0 0.0
    %617 = vmatpush1.msra.mxu0 0.0
    %618 = vmatprep.subr.mxu0 0.0
    %619 = vmatpush1.msra.mxu0 0.0
    %620 = vmatprep.subr.mxu0 0.0
    %621 = vmatpush1.msra.mxu0 0.0
    %622 = vmatprep.subr.mxu0 0.0
    %623 = vmatpush1.msra.mxu0 0.0
    %624 = vmatprep.mubr.f32.mxu0 0.0
    %625 = vmatmul.mubr.f32.gmra.mrb[0].mxu0 %v558
    %v626 = vpop.f32.mrb[0].mxu0
    %v627 = vadd.f32 0.0, %v626
    %v628 = vpop.f32.mrb[0].mxu0
    %629 = vdwg.mxu0
    %v630 = vadd.f32 %v132, %v627
    %v631 = vxor.u32 %v630, 2147483648
    %v632 = vmul.f32 %v631, 1.442695
    %v633 = vpow.pop %v632
    %v634 = vadd.f32 %v633, 1.0
    %v635 = vrcp.pop %v634
    %v636 = vmul.f32 1.0, %v635
    %v637 = vtanh.pop %v630
    %v639 = vrot.slane %v547, 6
    %v641 = vmul.f32 %v636, %v639
    %643 = vrot.lane.b32.xlu0 %v637, 64
    %v644 = vpop.permute.xlu0 %643
    %v646 = vmul.f32 %v636, %v644
    %648 = vrot.lane.b32.xlu0 %v646, 32
    %v649 = vpop.permute.xlu0 %648
    %v651 = vadd.f32 %v641, %v649
    %v652 = vtanh.pop %v651
    %654 = vrot.lane.b32.xlu0 %v652, 64
    %v655 = vpop.permute.xlu0 %654
    %v657 = vmul.f32 %v636, %v655
    %659 = vrot.lane.b32.xlu0 %v657, 32
    %v660 = vpop.permute.xlu0 %659
    %v661 = vsel %vm135, %v660, 0
    %663 = vmatprep.subr.mxu0 0.0
    %664 = vmatpush1.msra.mxu0 %v41
    %665 = vmatprep.subr.mxu0 0.0
    %666 = vmatpush1.msra.mxu0 %v42
    %667 = vmatprep.subr.mxu0 0.0
    %668 = vmatpush1.msra.mxu0 %v43
    %669 = vmatprep.subr.mxu0 0.0
    %670 = vmatpush1.msra.mxu0 %v44
    %671 = vmatprep.subr.mxu0 0.0
    %672 = vmatpush1.msra.mxu0 0.0
    %673 = vmatprep.subr.mxu0 0.0
    %674 = vmatpush1.msra.mxu0 0.0
    %675 = vmatprep.subr.mxu0 0.0
    %676 = vmatpush1.msra.mxu0 0.0
    %677 = vmatprep.subr.mxu0 0.0
    %678 = vmatpush1.msra.mxu0 0.0
    %679 = vmatprep.subr.mxu0 0.0
    %680 = vmatpush1.msra.mxu0 0.0
    %681 = vmatprep.subr.mxu0 0.0
    %682 = vmatpush1.msra.mxu0 0.0
    %683 = vmatprep.subr.mxu0 0.0
    %684 = vmatpush1.msra.mxu0 0.0
    %685 = vmatprep.subr.mxu0 0.0
    %686 = vmatpush1.msra.mxu0 0.0
    %687 = vmatprep.subr.mxu0 0.0
    %688 = vmatpush1.msra.mxu0 0.0
    %689 = vmatprep.subr.mxu0 0.0
    %690 = vmatpush1.msra.mxu0 0.0
    %691 = vmatprep.subr.mxu0 0.0
    %692 = vmatpush1.msra.mxu0 0.0
    %693 = vmatprep.subr.mxu0 0.0
    %694 = vmatpush1.msra.mxu0 0.0
    %695 = vmatprep.subr.mxu0 0.0
    %696 = vmatpush1.msra.mxu0 0.0
    %697 = vmatprep.subr.mxu0 0.0
    %698 = vmatpush1.msra.mxu0 0.0
    %699 = vmatprep.subr.mxu0 0.0
    %700 = vmatpush1.msra.mxu0 0.0
    %701 = vmatprep.subr.mxu0 0.0
    %702 = vmatpush1.msra.mxu0 0.0
    %703 = vmatprep.subr.mxu0 0.0
    %704 = vmatpush1.msra.mxu0 0.0
    %705 = vmatprep.subr.mxu0 0.0
    %706 = vmatpush1.msra.mxu0 0.0
    %707 = vmatprep.subr.mxu0 0.0
    %708 = vmatpush1.msra.mxu0 0.0
    %709 = vmatprep.subr.mxu0 0.0
    %710 = vmatpush1.msra.mxu0 0.0
    %711 = vmatprep.subr.mxu0 0.0
    %712 = vmatpush1.msra.mxu0 0.0
    %713 = vmatprep.subr.mxu0 0.0
    %714 = vmatpush1.msra.mxu0 0.0
    %715 = vmatprep.subr.mxu0 0.0
    %716 = vmatpush1.msra.mxu0 0.0
    %717 = vmatprep.subr.mxu0 0.0
    %718 = vmatpush1.msra.mxu0 0.0
    %719 = vmatprep.subr.mxu0 0.0
    %720 = vmatpush1.msra.mxu0 0.0
    %721 = vmatprep.subr.mxu0 0.0
    %722 = vmatpush1.msra.mxu0 0.0
    %723 = vmatprep.subr.mxu0 0.0
    %724 = vmatpush1.msra.mxu0 0.0
    %725 = vmatprep.subr.mxu0 0.0
    %726 = vmatpush1.msra.mxu0 0.0
    %727 = vmatprep.mubr.f32.mxu0 0.0
    %728 = vmatmul.mubr.f32.gmra.mrb[0].mxu0 %v661
    %v729 = vpop.f32.mrb[0].mxu0
    %v730 = vadd.f32 0.0, %v729
    %v731 = vpop.f32.mrb[0].mxu0
    %732 = vdwg.mxu0
    %v734 = vrot.slane %v730, 6
    %v736 = vadd.f32 %v132, %v734
    %v737 = vxor.u32 %v736, 2147483648
    %v738 = vmul.f32 %v737, 1.442695
    %v739 = vpow.pop %v738
    %v740 = vadd.f32 %v739, 1.0
    %v741 = vrcp.pop %v740
    %v742 = vmul.f32 1.0, %v741
    %v743 = vtanh.pop %v736
    %v745 = vrot.slane %v651, 6
    %v747 = vmul.f32 %v742, %v745
    %749 = vrot.lane.b32.xlu0 %v743, 64
    %v750 = vpop.permute.xlu0 %749
    %v752 = vmul.f32 %v742, %v750
    %754 = vrot.lane.b32.xlu0 %v752, 32
    %v755 = vpop.permute.xlu0 %754
    %v757 = vadd.f32 %v747, %v755
    %v758 = vtanh.pop %v757
    %760 = vrot.lane.b32.xlu0 %v758, 64
    %v761 = vpop.permute.xlu0 %760
    %v763 = vmul.f32 %v742, %v761
    %v765 = vrot.slane %v763, 2
    %766 = vrot.lane.b32.xlu0 %v765, 32
    %v767 = vpop.permute.xlu0 %766
    %v768 = vsel %vm135, %v767, 0
    %770 = vmatprep.subr.mxu0 0.0
    %771 = vmatpush1.msra.mxu0 %v41
    %772 = vmatprep.subr.mxu0 0.0
    %773 = vmatpush1.msra.mxu0 %v42
    %774 = vmatprep.subr.mxu0 0.0
    %775 = vmatpush1.msra.mxu0 %v43
    %776 = vmatprep.subr.mxu0 0.0
    %777 = vmatpush1.msra.mxu0 %v44
    %778 = vmatprep.subr.mxu0 0.0
    %779 = vmatpush1.msra.mxu0 0.0
    %780 = vmatprep.subr.mxu0 0.0
    %781 = vmatpush1.msra.mxu0 0.0
    %782 = vmatprep.subr.mxu0 0.0
    %783 = vmatpush1.msra.mxu0 0.0
    %784 = vmatprep.subr.mxu0 0.0
    %785 = vmatpush1.msra.mxu0 0.0
    %786 = vmatprep.subr.mxu0 0.0
    %787 = vmatpush1.msra.mxu0 0.0
    %788 = vmatprep.subr.mxu0 0.0
    %789 = vmatpush1.msra.mxu0 0.0
    %790 = vmatprep.subr.mxu0 0.0
    %791 = vmatpush1.msra.mxu0 0.0
    %792 = vmatprep.subr.mxu0 0.0
    %793 = vmatpush1.msra.mxu0 0.0
    %794 = vmatprep.subr.mxu0 0.0
    %795 = vmatpush1.msra.mxu0 0.0
    %796 = vmatprep.subr.mxu0 0.0
    %797 = vmatpush1.msra.mxu0 0.0
    %798 = vmatprep.subr.mxu0 0.0
    %799 = vmatpush1.msra.mxu0 0.0
    %800 = vmatprep.subr.mxu0 0.0
    %801 = vmatpush1.msra.mxu0 0.0
    %802 = vmatprep.subr.mxu0 0.0
    %803 = vmatpush1.msra.mxu0 0.0
    %804 = vmatprep.subr.mxu0 0.0
    %805 = vmatpush1.msra.mxu0 0.0
    %806 = vmatprep.subr.mxu0 0.0
    %807 = vmatpush1.msra.mxu0 0.0
    %808 = vmatprep.subr.mxu0 0.0
    %809 = vmatpush1.msra.mxu0 0.0
    %810 = vmatprep.subr.mxu0 0.0
    %811 = vmatpush1.msra.mxu0 0.0
    %812 = vmatprep.subr.mxu0 0.0
    %813 = vmatpush1.msra.mxu0 0.0
    %814 = vmatprep.subr.mxu0 0.0
    %815 = vmatpush1.msra.mxu0 0.0
    %816 = vmatprep.subr.mxu0 0.0
    %817 = vmatpush1.msra.mxu0 0.0
    %818 = vmatprep.subr.mxu0 0.0
    %819 = vmatpush1.msra.mxu0 0.0
    %820 = vmatprep.subr.mxu0 0.0
    %821 = vmatpush1.msra.mxu0 0.0
    %822 = vmatprep.subr.mxu0 0.0
    %823 = vmatpush1.msra.mxu0 0.0
    %824 = vmatprep.subr.mxu0 0.0
    %825 = vmatpush1.msra.mxu0 0.0
    %826 = vmatprep.subr.mxu0 0.0
    %827 = vmatpush1.msra.mxu0 0.0
    %828 = vmatprep.subr.mxu0 0.0
    %829 = vmatpush1.msra.mxu0 0.0
    %830 = vmatprep.subr.mxu0 0.0
    %831 = vmatpush1.msra.mxu0 0.0
    %832 = vmatprep.subr.mxu0 0.0
    %833 = vmatpush1.msra.mxu0 0.0
    %834 = vmatprep.mubr.f32.mxu0 0.0
    %835 = vmatmul.mubr.f32.gmra.mrb[0].mxu0 %v768
    %v836 = vpop.f32.mrb[0].mxu0
    %v837 = vadd.f32 0.0, %v836
    %v838 = vpop.f32.mrb[0].mxu0
    %839 = vdwg.mxu0
    %v841 = vrot.slane %v837, 4
    %v843 = vadd.f32 %v132, %v841
    %v844 = vxor.u32 %v843, 2147483648
    %v845 = vmul.f32 %v844, 1.442695
    %v846 = vpow.pop %v845
    %v847 = vadd.f32 %v846, 1.0
    %v848 = vrcp.pop %v847
    %v849 = vmul.f32 1.0, %v848
    %v850 = vtanh.pop %v843
    %v852 = vrot.slane %v757, 6
    %v854 = vmul.f32 %v849, %v852
    %856 = vrot.lane.b32.xlu0 %v850, 64
    %v857 = vpop.permute.xlu0 %856
    %v859 = vmul.f32 %v849, %v857
    %861 = vrot.lane.b32.xlu0 %v859, 32
    %v862 = vpop.permute.xlu0 %861
    %v864 = vadd.f32 %v854, %v862
    %v865 = vtanh.pop %v864
    %867 = vrot.lane.b32.xlu0 %v865, 64
    %v868 = vpop.permute.xlu0 %867
    %v870 = vmul.f32 %v849, %v868
    %v872 = vrot.slane %v870, 4
    %873 = vrot.lane.b32.xlu0 %v872, 32
    %v874 = vpop.permute.xlu0 %873
    %v875 = vsel %vm135, %v874, 0
    %877 = vmatprep.subr.mxu0 0.0
    %878 = vmatpush1.msra.mxu0 %v41
    %879 = vmatprep.subr.mxu0 0.0
    %880 = vmatpush1.msra.mxu0 %v42
    %881 = vmatprep.subr.mxu0 0.0
    %882 = vmatpush1.msra.mxu0 %v43
    %883 = vmatprep.subr.mxu0 0.0
    %884 = vmatpush1.msra.mxu0 %v44
    %885 = vmatprep.subr.mxu0 0.0
    %886 = vmatpush1.msra.mxu0 0.0
    %887 = vmatprep.subr.mxu0 0.0
    %888 = vmatpush1.msra.mxu0 0.0
    %889 = vmatprep.subr.mxu0 0.0
    %890 = vmatpush1.msra.mxu0 0.0
    %891 = vmatprep.subr.mxu0 0.0
    %892 = vmatpush1.msra.mxu0 0.0
    %893 = vmatprep.subr.mxu0 0.0
    %894 = vmatpush1.msra.mxu0 0.0
    %895 = vmatprep.subr.mxu0 0.0
    %896 = vmatpush1.msra.mxu0 0.0
    %897 = vmatprep.subr.mxu0 0.0
    %898 = vmatpush1.msra.mxu0 0.0
    %899 = vmatprep.subr.mxu0 0.0
    %900 = vmatpush1.msra.mxu0 0.0
    %901 = vmatprep.subr.mxu0 0.0
    %902 = vmatpush1.msra.mxu0 0.0
    %903 = vmatprep.subr.mxu0 0.0
    %904 = vmatpush1.msra.mxu0 0.0
    %905 = vmatprep.subr.mxu0 0.0
    %906 = vmatpush1.msra.mxu0 0.0
    %907 = vmatprep.subr.mxu0 0.0
    %908 = vmatpush1.msra.mxu0 0.0
    %909 = vmatprep.subr.mxu0 0.0
    %910 = vmatpush1.msra.mxu0 0.0
    %911 = vmatprep.subr.mxu0 0.0
    %912 = vmatpush1.msra.mxu0 0.0
    %913 = vmatprep.subr.mxu0 0.0
    %914 = vmatpush1.msra.mxu0 0.0
    %915 = vmatprep.subr.mxu0 0.0
    %916 = vmatpush1.msra.mxu0 0.0
    %917 = vmatprep.subr.mxu0 0.0
    %918 = vmatpush1.msra.mxu0 0.0
    %919 = vmatprep.subr.mxu0 0.0
    %920 = vmatpush1.msra.mxu0 0.0
    %921 = vmatprep.subr.mxu0 0.0
    %922 = vmatpush1.msra.mxu0 0.0
    %923 = vmatprep.subr.mxu0 0.0
    %924 = vmatpush1.msra.mxu0 0.0
    %925 = vmatprep.subr.mxu0 0.0
    %926 = vmatpush1.msra.mxu0 0.0
    %927 = vmatprep.subr.mxu0 0.0
    %928 = vmatpush1.msra.mxu0 0.0
    %929 = vmatprep.subr.mxu0 0.0
    %930 = vmatpush1.msra.mxu0 0.0
    %931 = vmatprep.subr.mxu0 0.0
    %932 = vmatpush1.msra.mxu0 0.0
    %933 = vmatprep.subr.mxu0 0.0
    %934 = vmatpush1.msra.mxu0 0.0
    %935 = vmatprep.subr.mxu0 0.0
    %936 = vmatpush1.msra.mxu0 0.0
    %937 = vmatprep.subr.mxu0 0.0
    %938 = vmatpush1.msra.mxu0 0.0
    %939 = vmatprep.subr.mxu0 0.0
    %940 = vmatpush1.msra.mxu0 0.0
    %941 = vmatprep.mubr.f32.mxu0 0.0
    %942 = vmatmul.mubr.f32.gmra.mrb[0].mxu0 %v875
    %v943 = vpop.f32.mrb[0].mxu0
    %v944 = vadd.f32 0.0, %v943
    %v945 = vpop.f32.mrb[0].mxu0
    %946 = vdwg.mxu0
    %v948 = vrot.slane %v944, 2
    %v950 = vadd.f32 %v132, %v948
    %v951 = vxor.u32 %v950, 2147483648
    %v952 = vmul.f32 %v951, 1.442695
    %v953 = vpow.pop %v952
    %v954 = vadd.f32 %v953, 1.0
    %v955 = vrcp.pop %v954
    %v956 = vmul.f32 1.0, %v955
    %v957 = vtanh.pop %v950
    %v959 = vrot.slane %v864, 6
    %v961 = vmul.f32 %v956, %v959
    %963 = vrot.lane.b32.xlu0 %v957, 64
    %v964 = vpop.permute.xlu0 %963
    %v966 = vmul.f32 %v956, %v964
    %968 = vrot.lane.b32.xlu0 %v966, 32
    %v969 = vpop.permute.xlu0 %968
    %v971 = vadd.f32 %v961, %v969
    %v972 = vtanh.pop %v971
    %974 = vrot.lane.b32.xlu0 %v972, 64
    %v975 = vpop.permute.xlu0 %974
    %v977 = vmul.f32 %v956, %v975
    %vm978 = vcmask 1041408
    %v979 = vsel %vm978, %v233, %v339
    %vm980 = vcmask 1043456
    %v981 = vsel %vm980, %v979, %v446
    %vm982 = vcmask 1045504
    %v983 = vsel %vm982, %v981, %v553
    %v984 = vsel %vm978, %v657, %v763
    %v985 = vsel %vm980, %v984, %v870
    %v986 = vsel %vm982, %v985, %v977
    %v987 = vlaneseq
    %v988 = vshrl.u32 %v987, 7
    %v989 = vsub.s32 0, %v988
    %v990 = vrot.slane %v46, %v989
    %992 = vrot.lane.b32.xlu0 %v990, 96
    %v993 = vpop.permute.xlu0 %992
    %v995 = vmul.f32 %v983, %v993
    %v996 = vmul.f32 %v986, %v993
    %999 = vrot.lane.b32.xlu0 %v995, 32
    %v1000 = vpop.permute.xlu0 %999
    %1001 = vrot.lane.b32.xlu0 %v996, 32
    %v1002 = vpop.permute.xlu0 %1001
    %v1005 = vsel %vm135, %v1000, 0.0
    %1006 = vadd.xlane.f32.xlu0 %v1005
    %v1007 = vpop.xlane.xlu0 %1006
    %v1008 = vsel %vm135, %v1002, 0.0
    %1009 = vadd.xlane.f32.xlu0 %v1008
    %v1010 = vpop.xlane.xlu0 %1009
    %v1011 = vadd.f32 %v1007, %v990
    %v1012 = vadd.f32 %v1010, %v990
    %v1013 = vmul.f32 %v1011, 0.5
    %v1014 = vmul.f32 %v1012, 0.5
    %v1015 = vtanh.pop %v1013
    %v1016 = vtanh.pop %v1014
    %v1017 = vmul.f32 %v1015, 5.0
    %v1018 = vmul.f32 %v1016, 5.0
    %1021 = vrot.lane.b32.xlu0 %v1017, 96
    %v1022 = vpop.permute.xlu0 %1021
    %1023 = vrot.lane.b32.xlu0 %v1018, 96
    %v1024 = vpop.permute.xlu0 %1023
    %vm1027 = vcmask 7168
    %1028 = vst.msk [vmem:[%s2] sm:$0xff] %vm1027, %v1022
    %1029 = vst.msk [vmem:[%s2 + $0x8] sm:$0xff] %vm1027, %v1024
    // Predicated region
    $region18: #{tpu_custom_call.1} parent=1 // pred_check
      _
    $region19: #{tpu_custom_call.1} parent=1 // pred_check_branch
      %1031 = sbr.rel (0) target = $region21
    $region20: #{tpu_custom_call.1} parent=1 // pred_region
      _
    $region21: #{tpu_custom_call.1} parent=1 // pred_fallthru
      _
    // Predicated region
    $region22: #{tpu_custom_call.1} parent=1 // pred_check
      _
    $region23: #{tpu_custom_call.1} parent=1 // pred_check_branch
      %1033 = sbr.rel (0) target = $region25
    $region24: #{tpu_custom_call.1} parent=1 // pred_region
      _
    $region25: #{tpu_custom_call.1} parent=1 // pred_fallthru
      _
    %1034 = vsyncpa [#allocation3], 1
    %1035 = vsyncpa [#allocation5], 1

</llo_original>
